<compile_context>
chip_gen: v6e
topology: v6e:2x2x1
jax: 0.10.0
libtpu: 0.0.40
codegen_flags: <defaults>
</compile_context>

<pallas_src>
import jax
import jax.numpy as jnp
from jax import lax
from jax.experimental import pallas as pl
from jax.experimental.pallas import tpu as pltpu

EPS = 1e-8


def _round_up(n, m):
    return ((n + m - 1) // m) * m


def _eql_kernel(xt_ref, w1pt_ref, wct_ref, blt_ref, o_ref):
    # x^T tile: (in_f, TILE_B) -- batch rides the lane dimension.
    xt = xt_ref[...]
    logxt = jnp.log(jnp.abs(xt) + EPS)                        # EUP, full-lane
    ht = jnp.exp(jnp.dot(w1pt_ref[...], logxt,                # (h_state, TILE_B)
                         preferred_element_type=jnp.float32,
                         precision=lax.Precision.HIGHEST))
    # Fused output matmul: [W2p^T | Wl^T] @ [exp(h)^T ; x^T]   (sublane concat;
    # first operand has a sublane-aligned row count, so no XLU relayout).
    lhs = jnp.concatenate([ht, xt], axis=0)                   # (h_state+in_f, TILE_B)
    out_t = jnp.dot(wct_ref[...], lhs,
                    preferred_element_type=jnp.float32,
                    precision=lax.Precision.HIGHEST)          # (out_pad, TILE_B)
    o_ref[...] = (out_t + blt_ref[...]).astype(o_ref.dtype)   # bias bcast over lanes


def polinomial_eql_layer(x, params, *, tile_b=8192):
    """x: (B, in_features) float32. params: dict with w1p, w2p, wl, bl."""
    B, in_f = x.shape
    h_state = params["w1p"].shape[1]
    out_f = params["w2p"].shape[1]

    out_pad = _round_up(out_f, 8)            # sublane-dense transposed output rows

    # Transposed + fused weights, built once in the wrapper (tiny).
    w1pt = params["w1p"].T                                          # (h_state, in_f)
    wct = jnp.concatenate([params["w2p"].T, params["wl"].T], axis=1)
    wct = jnp.pad(wct, ((0, out_pad - out_f), (0, 0)))              # (out_pad, h+in)
    blt = jnp.pad(params["bl"].reshape(out_f, 1),
                  ((0, out_pad - out_f), (0, 0)))                   # (out_pad, 1)

    # Batch rides lanes: tile_b is a multiple of 128, capped for tiny B.
    tile_b = max(128, min(_round_up(tile_b, 128), _round_up(B, 128)))
    b_pad = _round_up(B, tile_b)
    # One HBM pass: transpose (layout plumbing) + zero-pad the lane/batch dim in
    # the same fused op.  log(0+eps) is finite and every op is column-independent,
    # so dead batch columns never mix with live ones and are sliced off below.
    xt = jnp.pad(x.T, ((0, 0), (0, b_pad - B)))

    grid = (b_pad // tile_b,)
    const_spec = lambda a: pl.BlockSpec(a.shape, lambda i: (0, 0))

    flops = 2 * b_pad * (in_f * h_state + (h_state + in_f) * out_pad)
    transcendentals = b_pad * (in_f + h_state)            # log + exp
    bytes_accessed = 4 * (b_pad * in_f + w1pt.size + wct.size + blt.size
                          + b_pad * out_pad)

    out_t = pl.pallas_call(
        _eql_kernel,
        out_shape=jax.ShapeDtypeStruct((out_pad, b_pad), jnp.float32),
        grid=grid,
        in_specs=[
            pl.BlockSpec((in_f, tile_b), lambda i: (0, i)),   # x^T tile (pipelined)
            const_spec(w1pt),   # constant block index -> weights stay VMEM-resident
            const_spec(wct),
            const_spec(blt),
        ],
        out_specs=pl.BlockSpec((out_pad, tile_b), lambda i: (0, i)),
        compiler_params=pltpu.CompilerParams(
            dimension_semantics=("parallel",)),
        cost_estimate=pl.CostEstimate(flops=flops,
                                      transcendentals=transcendentals,
                                      bytes_accessed=bytes_accessed),
    )(xt, w1pt, wct, blt)

    return out_t[:out_f, :B].T


def init_params(key, in_features, h_state, out_features):
    ks = jax.random.split(key, 4)
    s1 = 1.0 / jnp.sqrt(in_features)
    s2 = 1.0 / jnp.sqrt(h_state)
    u = lambda k, shape, s: jax.random.uniform(k, shape, jnp.float32, -s, s)
    return {
        # power module
        "w1p": u(ks[0], (in_features, h_state), s1),
        "w2p": u(ks[1], (h_state, out_features), s2),
        # linear module (bias=True)
        "wl": u(ks[2], (in_features, out_features), s1),
        "bl": u(ks[3], (out_features,), s1),
    }


def _reference(x, p):
    """Pure-JAX reference of the same forward pass (matched matmul precision)."""
    logx = jnp.log(jnp.abs(x) + EPS)
    h_p = jnp.exp(jnp.dot(logx, p["w1p"], precision=lax.Precision.HIGHEST))
    power_out = jnp.dot(h_p, p["w2p"], precision=lax.Precision.HIGHEST)
    lin_out = jnp.dot(x, p["wl"], precision=lax.Precision.HIGHEST) + p["bl"]
    return power_out + lin_out


if __name__ == "__main__":
    key = jax.random.PRNGKey(0)
    k_x, k_p = jax.random.split(key)

    batch, in_features, h_state, out_features = 8, 4, 32, 1

    x = jax.random.normal(k_x, (batch, in_features), jnp.float32)
    params = init_params(k_p, in_features, h_state, out_features)

    out = jax.block_until_ready(polinomial_eql_layer(x, params))

    ref = _reference(x, params)
    assert out.shape == (batch, out_features)
    assert jnp.allclose(out, ref, rtol=1e-4, atol=1e-4), "mismatch vs reference"

    print("KERNEL_OK")
</pallas_src>

<mosaic_0001>
module attributes {stable_mosaic.version = 11 : i64} {
  func.func @_eql_kernel(%arg0: i32, %arg1: memref<4x128xf32, #tpu.memory_space<vmem>>, %arg2: memref<32x4xf32, #tpu.memory_space<vmem>>, %arg3: memref<8x36xf32, #tpu.memory_space<vmem>>, %arg4: memref<8x1xf32, #tpu.memory_space<vmem>>, %arg5: memref<8x128xf32, #tpu.memory_space<vmem>>) attributes {dimension_semantics = [#tpu.dimension_semantics<parallel>], iteration_bounds = array<i64: 1>, scalar_prefetch = 0 : i64, scratch_operands = 0 : i64, tpu.core_type = #tpu.core_type<tc>, window_params = [{transform_indices = @transform_0, window_bounds = array<i64: 4, 128>}, {pipeline_mode = #tpu.pipeline_mode<synchronous>, transform_indices = @transform_1, window_bounds = array<i64: 32, 4>}, {pipeline_mode = #tpu.pipeline_mode<synchronous>, transform_indices = @transform_2, window_bounds = array<i64: 8, 36>}, {pipeline_mode = #tpu.pipeline_mode<synchronous>, transform_indices = @transform_3, window_bounds = array<i64: 8, 1>}, {transform_indices = @transform_4, window_bounds = array<i64: 8, 128>}]} {
    %c0 = arith.constant 0 : index
    %c0_0 = arith.constant 0 : index
    %0 = vector.load %arg1[%c0, %c0_0] : memref<4x128xf32, #tpu.memory_space<vmem>>, vector<4x128xf32>
    %1 = math.absf %0 : vector<4x128xf32>
    %cst = arith.constant 9.99999993E-9 : f32
    %2 = vector.broadcast %cst : f32 to vector<4x128xf32>
    %3 = arith.addf %1, %2 : vector<4x128xf32>
    %4 = math.log %3 : vector<4x128xf32>
    %c0_1 = arith.constant 0 : index
    %c0_2 = arith.constant 0 : index
    %5 = vector.load %arg2[%c0_1, %c0_2] : memref<32x4xf32, #tpu.memory_space<vmem>>, vector<32x4xf32>
    %cst_3 = arith.constant dense<0.000000e+00> : vector<32x128xf32>
    %6 = tpu.matmul %5, %4, %cst_3 {dimension_numbers = #tpu.dot_dimension_numbers<[1], [0], [0], [1], [0, 0, 1, 1], [], []>, precision = #tpu.contract_precision<fp32>} : vector<32x4xf32>, vector<4x128xf32>, vector<32x128xf32> -> vector<32x128xf32>
    %7 = math.exp %6 : vector<32x128xf32>
    %8 = tpu.concatenate %7, %0 in 0 : vector<32x128xf32>, vector<4x128xf32> -> vector<36x128xf32>
    %c0_4 = arith.constant 0 : index
    %c0_5 = arith.constant 0 : index
    %9 = vector.load %arg3[%c0_4, %c0_5] : memref<8x36xf32, #tpu.memory_space<vmem>>, vector<8x36xf32>
    %cst_6 = arith.constant dense<0.000000e+00> : vector<8x128xf32>
    %10 = tpu.matmul %9, %8, %cst_6 {dimension_numbers = #tpu.dot_dimension_numbers<[1], [0], [0], [1], [0, 0, 1, 1], [], []>, precision = #tpu.contract_precision<fp32>} : vector<8x36xf32>, vector<36x128xf32>, vector<8x128xf32> -> vector<8x128xf32>
    %c0_7 = arith.constant 0 : index
    %c0_8 = arith.constant 0 : index
    %11 = vector.load %arg4[%c0_7, %c0_8] : memref<8x1xf32, #tpu.memory_space<vmem>>, vector<8x1xf32>
    %12 = vector.broadcast %11 : vector<8x1xf32> to vector<8x128xf32>
    %13 = arith.addf %10, %12 : vector<8x128xf32>
    %c0_9 = arith.constant 0 : index
    %c0_10 = arith.constant 0 : index
    %14 = vector.load %arg5[%c0_9, %c0_10] : memref<8x128xf32, #tpu.memory_space<vmem>>, vector<8x128xf32>
    tpu.vector_store %arg5[%c0_9, %c0_10], %13 {strides = array<i32>} : memref<8x128xf32, #tpu.memory_space<vmem>>, vector<8x128xf32>,
    return
  }
  func.func @transform_0(%arg0: i32) -> (i32, i32) {
    %c0_i32 = arith.constant 0 : i32
    %c0_i32_0 = arith.constant 0 : i32
    return %c0_i32, %arg0 : i32, i32
  }
  func.func @transform_1(%arg0: i32) -> (i32, i32) {
    %c0_i32 = arith.constant 0 : i32
    %c0_i32_0 = arith.constant 0 : i32
    %c0_i32_1 = arith.constant 0 : i32
    return %c0_i32, %c0_i32_0 : i32, i32
  }
  func.func @transform_2(%arg0: i32) -> (i32, i32) {
    %c0_i32 = arith.constant 0 : i32
    %c0_i32_0 = arith.constant 0 : i32
    %c0_i32_1 = arith.constant 0 : i32
    return %c0_i32, %c0_i32_0 : i32, i32
  }
  func.func @transform_3(%arg0: i32) -> (i32, i32) {
    %c0_i32 = arith.constant 0 : i32
    %c0_i32_0 = arith.constant 0 : i32
    %c0_i32_1 = arith.constant 0 : i32
    return %c0_i32, %c0_i32_0 : i32, i32
  }
  func.func @transform_4(%arg0: i32) -> (i32, i32) {
    %c0_i32 = arith.constant 0 : i32
    %c0_i32_0 = arith.constant 0 : i32
    return %c0_i32, %arg0 : i32, i32
  }
}

</mosaic_0001>

<llo_original>
// kernel: tpu_custom_call.1
$region0: #{tpu_custom_call.1}
  #allocation0 [shape = 'u32[]', space=smem, size = 0x4, offset = 0x4, fixed_abs, tag = 'smem constant byte address 0x4 - core index']
  #allocation1 [shape = 'u32[144,128]{1,0:T(1,128)}', space=vmem, size = 0x12000, scoped, tag = 'internal scratch']
  %s0 = inlined_call_operand.vmem [shape: f32[4,128], index: 0, kind: input, shape index: {}]
  %s1 = inlined_call_operand.vmem [shape: f32[32,4], index: 1, kind: input, shape index: {}]
  %s2 = inlined_call_operand.vmem [shape: f32[8,36], index: 2, kind: input, shape index: {}]
  %s3 = inlined_call_operand.vmem [shape: f32[8,1], index: 3, kind: input, shape index: {}]
  %s4 = inlined_call_operand.hbm [shape: f32[8,128], index: 4, kind: output, shape index: {}]
  %s5 = sld [smem:[#allocation0]]
  $region26: #{tpu_custom_call.1} parent=0
    _
  %s7 = ssub.s32 1, %s5
  %s8 = scalar_select 0, %s7, %s5
  $region1: #{tpu_custom_call.1} parent=0
    #allocation2 [shape = 'u8[4096]{0}', space=vmem, size = 0x1000, scoped, tag = 'output window, operand 0, single buffered']
    #allocation3 [shape = 's32[1]{0}', space=sflag, size = 0x4, scoped, tag = 'scoped memory for tpu_custom_call.1']
    %9 = vsyncpa [#allocation3], 0
    // Predicated region
    $region2: #{tpu_custom_call.1} parent=1 // pred_check
      _
    $region3: #{tpu_custom_call.1} parent=1 // pred_check_branch
      %11 = sbr.rel (0) target = $region5
    $region4: #{tpu_custom_call.1} parent=1 // pred_region
      _
    $region5: #{tpu_custom_call.1} parent=1 // pred_fallthru
      _
    // Predicated region
    $region6: #{tpu_custom_call.1} parent=1 // pred_check
      _
    $region7: #{tpu_custom_call.1} parent=1 // pred_check_branch
      %13 = sbr.rel (0) target = $region9
    $region8: #{tpu_custom_call.1} parent=1 // pred_region
      _
    $region9: #{tpu_custom_call.1} parent=1 // pred_fallthru
      _
    // Predicated region
    $region10: #{tpu_custom_call.1} parent=1 // pred_check
      _
    $region11: #{tpu_custom_call.1} parent=1 // pred_check_branch
      %15 = sbr.rel (0) target = $region13
    $region12: #{tpu_custom_call.1} parent=1 // pred_region
      _
    $region13: #{tpu_custom_call.1} parent=1 // pred_fallthru
      _
    // Predicated region
    $region14: #{tpu_custom_call.1} parent=1 // pred_check
      _
    $region15: #{tpu_custom_call.1} parent=1 // pred_check_branch
      %17 = sbr.rel (0) target = $region17
    $region16: #{tpu_custom_call.1} parent=1 // pred_region
      _
    $region17: #{tpu_custom_call.1} parent=1 // pred_fallthru
      _
    %v18 = vld [vmem:[%s0] sm:$0xf]
    %v19 = vand.u32 2147483647, %v18
    %v20 = vadd.f32 %v19, 1e-08
    %v21 = vlog2.pop %v20
    %v22 = vmul.f32 %v21, 0.6931472
    %v23 = vld [vmem:[%s1] sm:$0xff]
    %v24 = vld [vmem:[%s1 + $0x8] sm:$0xff]
    %v25 = vld [vmem:[%s1 + $0x10] sm:$0xff]
    %v26 = vld [vmem:[%s1 + $0x18] sm:$0xff]
    %vm27 = vcmask 31744
    %v29 = vsel %vm27, %v23, 0
    %v32 = vsel %vm27, %v24, 0
    %v35 = vsel %vm27, %v25, 0
    %v38 = vsel %vm27, %v26, 0
    %vm40 = vcmask 1043456
    %v42 = vsel %vm40, %v22, 0
    %44 = vmatprep.subr.mxu0 0.0
    %45 = vmatpush1.msra.mxu0 0.0
    %46 = vmatprep.subr.mxu0 0.0
    %47 = vmatpush1.msra.mxu0 0.0
    %48 = vmatprep.subr.mxu0 0.0
    %49 = vmatpush1.msra.mxu0 0.0
    %50 = vmatprep.subr.mxu0 0.0
    %51 = vmatpush1.msra.mxu0 0.0
    %52 = vmatprep.subr.mxu0 0.0
    %53 = vmatpush1.msra.mxu0 0.0
    %54 = vmatprep.subr.mxu0 0.0
    %55 = vmatpush1.msra.mxu0 0.0
    %56 = vmatprep.subr.mxu0 0.0
    %57 = vmatpush1.msra.mxu0 0.0
    %58 = vmatprep.subr.mxu0 0.0
    %59 = vmatpush1.msra.mxu0 0.0
    %60 = vmatprep.subr.mxu0 0.0
    %61 = vmatpush1.msra.mxu0 0.0
    %62 = vmatprep.subr.mxu0 0.0
    %63 = vmatpush1.msra.mxu0 0.0
    %64 = vmatprep.subr.mxu0 0.0
    %65 = vmatpush1.msra.mxu0 0.0
    %66 = vmatprep.subr.mxu0 0.0
    %67 = vmatpush1.msra.mxu0 0.0
    %68 = vmatprep.subr.mxu0 0.0
    %69 = vmatpush1.msra.mxu0 0.0
    %70 = vmatprep.subr.mxu0 0.0
    %71 = vmatpush1.msra.mxu0 0.0
    %72 = vmatprep.subr.mxu0 0.0
    %73 = vmatpush1.msra.mxu0 0.0
    %74 = vmatprep.subr.mxu0 0.0
    %v75 = vand.u32 %v42, 4294901760
    %76 = vmatpush1.msra.mxu0 %v75
    %77 = vmatprep.subr.mxu0 0.0
    %78 = vmatpush2.msra.mxu0 0.0
    %79 = vmatprep.subr.mxu0 0.0
    %80 = vmatpush2.msra.mxu0 0.0
    %81 = vmatprep.subr.mxu0 0.0
    %82 = vmatpush2.msra.mxu0 0.0
    %83 = vmatprep.subr.mxu0 0.0
    %84 = vmatpush2.msra.mxu0 0.0
    %85 = vmatprep.subr.mxu0 0.0
    %86 = vmatpush2.msra.mxu0 0.0
    %87 = vmatprep.subr.mxu0 0.0
    %88 = vmatpush2.msra.mxu0 0.0
    %89 = vmatprep.subr.mxu0 0.0
    %90 = vmatpush2.msra.mxu0 0.0
    %91 = vmatprep.subr.mxu0 0.0
    %92 = vmatpush2.msra.mxu0 0.0
    %93 = vmatprep.subr.mxu0 0.0
    %94 = vmatpush2.msra.mxu0 0.0
    %95 = vmatprep.subr.mxu0 0.0
    %96 = vmatpush2.msra.mxu0 0.0
    %97 = vmatprep.subr.mxu0 0.0
    %98 = vmatpush2.msra.mxu0 0.0
    %99 = vmatprep.subr.mxu0 0.0
    %100 = vmatpush2.msra.mxu0 0.0
    %101 = vmatprep.subr.mxu0 0.0
    %102 = vmatpush2.msra.mxu0 0.0
    %103 = vmatprep.subr.mxu0 0.0
    %104 = vmatpush2.msra.mxu0 0.0
    %105 = vmatprep.subr.mxu0 0.0
    %106 = vmatpush2.msra.mxu0 0.0
    %107 = vmatprep.subr.mxu0 0.0
    %108 = vmatpush2.msra.mxu0 0.0
    %109 = vmatprep.mubr.f32.mxu0 0.0
    %v110 = vand.u32 %v29, 4294901760
    %v111 = vsub.f32 %v29, %v110
    %v112 = vand.u32 %v111, 4294901760
    %v113 = vsub.f32 %v111, %v112
    %v114 = vand.u32 %v113, 4294901760
    %115 = vmatmul.mubr.f32.gmra.mxu0 %v114
    %v116 = vpop.f32.mrf.mxu0
    %v117 = vadd.f32 0.0, %v116
    %v118 = vpop.f32.mrf.mxu0
    %119 = vmatprep.mubr.f32.mxu0 0.0
    %v120 = vand.u32 %v32, 4294901760
    %v121 = vsub.f32 %v32, %v120
    %v122 = vand.u32 %v121, 4294901760
    %v123 = vsub.f32 %v121, %v122
    %v124 = vand.u32 %v123, 4294901760
    %125 = vmatmul.mubr.f32.gmra.mxu0 %v124
    %v126 = vpop.f32.mrf.mxu0
    %v127 = vadd.f32 0.0, %v126
    %v128 = vpop.f32.mrf.mxu0
    %129 = vmatprep.mubr.f32.mxu0 0.0
    %v130 = vand.u32 %v35, 4294901760
    %v131 = vsub.f32 %v35, %v130
    %v132 = vand.u32 %v131, 4294901760
    %v133 = vsub.f32 %v131, %v132
    %v134 = vand.u32 %v133, 4294901760
    %135 = vmatmul.mubr.f32.gmra.mxu0 %v134
    %v136 = vpop.f32.mrf.mxu0
    %v137 = vadd.f32 0.0, %v136
    %v138 = vpop.f32.mrf.mxu0
    %139 = vmatprep.mubr.f32.mxu0 0.0
    %v140 = vand.u32 %v38, 4294901760
    %v141 = vsub.f32 %v38, %v140
    %v142 = vand.u32 %v141, 4294901760
    %v143 = vsub.f32 %v141, %v142
    %v144 = vand.u32 %v143, 4294901760
    %145 = vmatmul.mubr.f32.gmra.mxu0 %v144
    %v146 = vpop.f32.mrf.mxu0
    %v147 = vadd.f32 0.0, %v146
    %v148 = vpop.f32.mrf.mxu0
    %149 = vdwg.mxu0
    %150 = vmatprep.subr.mxu0 0.0
    %151 = vmatpush1.msra.mxu0 0.0
    %152 = vmatprep.subr.mxu0 0.0
    %153 = vmatpush1.msra.mxu0 0.0
    %154 = vmatprep.subr.mxu0 0.0
    %155 = vmatpush1.msra.mxu0 0.0
    %156 = vmatprep.subr.mxu0 0.0
    %157 = vmatpush1.msra.mxu0 0.0
    %158 = vmatprep.subr.mxu0 0.0
    %159 = vmatpush1.msra.mxu0 0.0
    %160 = vmatprep.subr.mxu0 0.0
    %161 = vmatpush1.msra.mxu0 0.0
    %162 = vmatprep.subr.mxu0 0.0
    %163 = vmatpush1.msra.mxu0 0.0
    %164 = vmatprep.subr.mxu0 0.0
    %165 = vmatpush1.msra.mxu0 0.0
    %166 = vmatprep.subr.mxu0 0.0
    %167 = vmatpush1.msra.mxu0 0.0
    %168 = vmatprep.subr.mxu0 0.0
    %169 = vmatpush1.msra.mxu0 0.0
    %170 = vmatprep.subr.mxu0 0.0
    %171 = vmatpush1.msra.mxu0 0.0
    %172 = vmatprep.subr.mxu0 0.0
    %173 = vmatpush1.msra.mxu0 0.0
    %174 = vmatprep.subr.mxu0 0.0
    %175 = vmatpush1.msra.mxu0 0.0
    %176 = vmatprep.subr.mxu0 0.0
    %177 = vmatpush1.msra.mxu0 0.0
    %178 = vmatprep.subr.mxu0 0.0
    %179 = vmatpush1.msra.mxu0 0.0
    %180 = vmatprep.subr.mxu0 0.0
    %v181 = vand.u32 %v42, 4294901760
    %v182 = vsub.f32 %v42, %v181
    %v183 = vand.u32 %v182, 4294901760
    %v184 = vsub.f32 %v182, %v183
    %v185 = vand.u32 %v184, 4294901760
    %186 = vmatpush1.msra.mxu0 %v185
    %187 = vmatprep.subr.mxu0 0.0
    %188 = vmatpush2.msra.mxu0 0.0
    %189 = vmatprep.subr.mxu0 0.0
    %190 = vmatpush2.msra.mxu0 0.0
    %191 = vmatprep.subr.mxu0 0.0
    %192 = vmatpush2.msra.mxu0 0.0
    %193 = vmatprep.subr.mxu0 0.0
    %194 = vmatpush2.msra.mxu0 0.0
    %195 = vmatprep.subr.mxu0 0.0
    %196 = vmatpush2.msra.mxu0 0.0
    %197 = vmatprep.subr.mxu0 0.0
    %198 = vmatpush2.msra.mxu0 0.0
    %199 = vmatprep.subr.mxu0 0.0
    %200 = vmatpush2.msra.mxu0 0.0
    %201 = vmatprep.subr.mxu0 0.0
    %202 = vmatpush2.msra.mxu0 0.0
    %203 = vmatprep.subr.mxu0 0.0
    %204 = vmatpush2.msra.mxu0 0.0
    %205 = vmatprep.subr.mxu0 0.0
    %206 = vmatpush2.msra.mxu0 0.0
    %207 = vmatprep.subr.mxu0 0.0
    %208 = vmatpush2.msra.mxu0 0.0
    %209 = vmatprep.subr.mxu0 0.0
    %210 = vmatpush2.msra.mxu0 0.0
    %211 = vmatprep.subr.mxu0 0.0
    %212 = vmatpush2.msra.mxu0 0.0
    %213 = vmatprep.subr.mxu0 0.0
    %214 = vmatpush2.msra.mxu0 0.0
    %215 = vmatprep.subr.mxu0 0.0
    %216 = vmatpush2.msra.mxu0 0.0
    %217 = vmatprep.subr.mxu0 0.0
    %218 = vmatpush2.msra.mxu0 0.0
    %219 = vmatprep.mubr.f32.mxu0 0.0
    %v220 = vand.u32 %v29, 4294901760
    %221 = vmatmul.mubr.f32.gmra.mxu0 %v220
    %v222 = vpop.f32.mrf.mxu0
    %v223 = vadd.f32 %v117, %v222
    %v224 = vpop.f32.mrf.mxu0
    %225 = vmatprep.mubr.f32.mxu0 0.0
    %v226 = vand.u32 %v32, 4294901760
    %227 = vmatmul.mubr.f32.gmra.mxu0 %v226
    %v228 = vpop.f32.mrf.mxu0
    %v229 = vadd.f32 %v127, %v228
    %v230 = vpop.f32.mrf.mxu0
    %231 = vmatprep.mubr.f32.mxu0 0.0
    %v232 = vand.u32 %v35, 4294901760
    %233 = vmatmul.mubr.f32.gmra.mxu0 %v232
    %v234 = vpop.f32.mrf.mxu0
    %v235 = vadd.f32 %v137, %v234
    %v236 = vpop.f32.mrf.mxu0
    %237 = vmatprep.mubr.f32.mxu0 0.0
    %v238 = vand.u32 %v38, 4294901760
    %239 = vmatmul.mubr.f32.gmra.mxu0 %v238
    %v240 = vpop.f32.mrf.mxu0
    %v241 = vadd.f32 %v147, %v240
    %v242 = vpop.f32.mrf.mxu0
    %243 = vdwg.mxu0
    %244 = vmatprep.subr.mxu0 0.0
    %245 = vmatpush1.msra.mxu0 0.0
    %246 = vmatprep.subr.mxu0 0.0
    %247 = vmatpush1.msra.mxu0 0.0
    %248 = vmatprep.subr.mxu0 0.0
    %249 = vmatpush1.msra.mxu0 0.0
    %250 = vmatprep.subr.mxu0 0.0
    %251 = vmatpush1.msra.mxu0 0.0
    %252 = vmatprep.subr.mxu0 0.0
    %253 = vmatpush1.msra.mxu0 0.0
    %254 = vmatprep.subr.mxu0 0.0
    %255 = vmatpush1.msra.mxu0 0.0
    %256 = vmatprep.subr.mxu0 0.0
    %257 = vmatpush1.msra.mxu0 0.0
    %258 = vmatprep.subr.mxu0 0.0
    %259 = vmatpush1.msra.mxu0 0.0
    %260 = vmatprep.subr.mxu0 0.0
    %261 = vmatpush1.msra.mxu0 0.0
    %262 = vmatprep.subr.mxu0 0.0
    %263 = vmatpush1.msra.mxu0 0.0
    %264 = vmatprep.subr.mxu0 0.0
    %265 = vmatpush1.msra.mxu0 0.0
    %266 = vmatprep.subr.mxu0 0.0
    %267 = vmatpush1.msra.mxu0 0.0
    %268 = vmatprep.subr.mxu0 0.0
    %269 = vmatpush1.msra.mxu0 0.0
    %270 = vmatprep.subr.mxu0 0.0
    %271 = vmatpush1.msra.mxu0 0.0
    %272 = vmatprep.subr.mxu0 0.0
    %273 = vmatpush1.msra.mxu0 0.0
    %274 = vmatprep.subr.mxu0 0.0
    %v275 = vand.u32 %v42, 4294901760
    %v276 = vsub.f32 %v42, %v275
    %277 = vmatpush1.msra.mxu0 %v276
    %278 = vmatprep.subr.mxu0 0.0
    %279 = vmatpush2.msra.mxu0 0.0
    %280 = vmatprep.subr.mxu0 0.0
    %281 = vmatpush2.msra.mxu0 0.0
    %282 = vmatprep.subr.mxu0 0.0
    %283 = vmatpush2.msra.mxu0 0.0
    %284 = vmatprep.subr.mxu0 0.0
    %285 = vmatpush2.msra.mxu0 0.0
    %286 = vmatprep.subr.mxu0 0.0
    %287 = vmatpush2.msra.mxu0 0.0
    %288 = vmatprep.subr.mxu0 0.0
    %289 = vmatpush2.msra.mxu0 0.0
    %290 = vmatprep.subr.mxu0 0.0
    %291 = vmatpush2.msra.mxu0 0.0
    %292 = vmatprep.subr.mxu0 0.0
    %293 = vmatpush2.msra.mxu0 0.0
    %294 = vmatprep.subr.mxu0 0.0
    %295 = vmatpush2.msra.mxu0 0.0
    %296 = vmatprep.subr.mxu0 0.0
    %297 = vmatpush2.msra.mxu0 0.0
    %298 = vmatprep.subr.mxu0 0.0
    %299 = vmatpush2.msra.mxu0 0.0
    %300 = vmatprep.subr.mxu0 0.0
    %301 = vmatpush2.msra.mxu0 0.0
    %302 = vmatprep.subr.mxu0 0.0
    %303 = vmatpush2.msra.mxu0 0.0
    %304 = vmatprep.subr.mxu0 0.0
    %305 = vmatpush2.msra.mxu0 0.0
    %306 = vmatprep.subr.mxu0 0.0
    %307 = vmatpush2.msra.mxu0 0.0
    %308 = vmatprep.subr.mxu0 0.0
    %309 = vmatpush2.msra.mxu0 0.0
    %310 = vmatprep.mubr.f32.mxu0 0.0
    %v311 = vand.u32 %v29, 4294901760
    %v312 = vsub.f32 %v29, %v311
    %313 = vmatmul.mubr.f32.gmra.mxu0 %v312
    %v314 = vpop.f32.mrf.mxu0
    %v315 = vadd.f32 %v223, %v314
    %v316 = vpop.f32.mrf.mxu0
    %317 = vmatprep.mubr.f32.mxu0 0.0
    %v318 = vand.u32 %v32, 4294901760
    %v319 = vsub.f32 %v32, %v318
    %320 = vmatmul.mubr.f32.gmra.mxu0 %v319
    %v321 = vpop.f32.mrf.mxu0
    %v322 = vadd.f32 %v229, %v321
    %v323 = vpop.f32.mrf.mxu0
    %324 = vmatprep.mubr.f32.mxu0 0.0
    %v325 = vand.u32 %v35, 4294901760
    %v326 = vsub.f32 %v35, %v325
    %327 = vmatmul.mubr.f32.gmra.mxu0 %v326
    %v328 = vpop.f32.mrf.mxu0
    %v329 = vadd.f32 %v235, %v328
    %v330 = vpop.f32.mrf.mxu0
    %331 = vmatprep.mubr.f32.mxu0 0.0
    %v332 = vand.u32 %v38, 4294901760
    %v333 = vsub.f32 %v38, %v332
    %334 = vmatmul.mubr.f32.gmra.mxu0 %v333
    %v335 = vpop.f32.mrf.mxu0
    %v336 = vadd.f32 %v241, %v335
    %v337 = vpop.f32.mrf.mxu0
    %338 = vdwg.mxu0
    %339 = vmatprep.subr.mxu0 0.0
    %340 = vmatpush1.msra.mxu0 0.0
    %341 = vmatprep.subr.mxu0 0.0
    %342 = vmatpush1.msra.mxu0 0.0
    %343 = vmatprep.subr.mxu0 0.0
    %344 = vmatpush1.msra.mxu0 0.0
    %345 = vmatprep.subr.mxu0 0.0
    %346 = vmatpush1.msra.mxu0 0.0
    %347 = vmatprep.subr.mxu0 0.0
    %348 = vmatpush1.msra.mxu0 0.0
    %349 = vmatprep.subr.mxu0 0.0
    %350 = vmatpush1.msra.mxu0 0.0
    %351 = vmatprep.subr.mxu0 0.0
    %352 = vmatpush1.msra.mxu0 0.0
    %353 = vmatprep.subr.mxu0 0.0
    %354 = vmatpush1.msra.mxu0 0.0
    %355 = vmatprep.subr.mxu0 0.0
    %356 = vmatpush1.msra.mxu0 0.0
    %357 = vmatprep.subr.mxu0 0.0
    %358 = vmatpush1.msra.mxu0 0.0
    %359 = vmatprep.subr.mxu0 0.0
    %360 = vmatpush1.msra.mxu0 0.0
    %361 = vmatprep.subr.mxu0 0.0
    %362 = vmatpush1.msra.mxu0 0.0
    %363 = vmatprep.subr.mxu0 0.0
    %364 = vmatpush1.msra.mxu0 0.0
    %365 = vmatprep.subr.mxu0 0.0
    %366 = vmatpush1.msra.mxu0 0.0
    %367 = vmatprep.subr.mxu0 0.0
    %368 = vmatpush1.msra.mxu0 0.0
    %369 = vmatprep.subr.mxu0 0.0
    %v370 = vand.u32 %v42, 4294901760
    %371 = vmatpush1.msra.mxu0 %v370
    %372 = vmatprep.subr.mxu0 0.0
    %373 = vmatpush2.msra.mxu0 0.0
    %374 = vmatprep.subr.mxu0 0.0
    %375 = vmatpush2.msra.mxu0 0.0
    %376 = vmatprep.subr.mxu0 0.0
    %377 = vmatpush2.msra.mxu0 0.0
    %378 = vmatprep.subr.mxu0 0.0
    %379 = vmatpush2.msra.mxu0 0.0
    %380 = vmatprep.subr.mxu0 0.0
    %381 = vmatpush2.msra.mxu0 0.0
    %382 = vmatprep.subr.mxu0 0.0
    %383 = vmatpush2.msra.mxu0 0.0
    %384 = vmatprep.subr.mxu0 0.0
    %385 = vmatpush2.msra.mxu0 0.0
    %386 = vmatprep.subr.mxu0 0.0
    %387 = vmatpush2.msra.mxu0 0.0
    %388 = vmatprep.subr.mxu0 0.0
    %389 = vmatpush2.msra.mxu0 0.0
    %390 = vmatprep.subr.mxu0 0.0
    %391 = vmatpush2.msra.mxu0 0.0
    %392 = vmatprep.subr.mxu0 0.0
    %393 = vmatpush2.msra.mxu0 0.0
    %394 = vmatprep.subr.mxu0 0.0
    %395 = vmatpush2.msra.mxu0 0.0
    %396 = vmatprep.subr.mxu0 0.0
    %397 = vmatpush2.msra.mxu0 0.0
    %398 = vmatprep.subr.mxu0 0.0
    %399 = vmatpush2.msra.mxu0 0.0
    %400 = vmatprep.subr.mxu0 0.0
    %401 = vmatpush2.msra.mxu0 0.0
    %402 = vmatprep.subr.mxu0 0.0
    %403 = vmatpush2.msra.mxu0 0.0
    %404 = vmatprep.mubr.f32.mxu0 0.0
    %v405 = vand.u32 %v29, 4294901760
    %v406 = vsub.f32 %v29, %v405
    %v407 = vand.u32 %v406, 4294901760
    %408 = vmatmul.mubr.f32.gmra.mxu0 %v407
    %v409 = vpop.f32.mrf.mxu0
    %v410 = vadd.f32 %v315, %v409
    %v411 = vpop.f32.mrf.mxu0
    %412 = vmatprep.mubr.f32.mxu0 0.0
    %v413 = vand.u32 %v32, 4294901760
    %v414 = vsub.f32 %v32, %v413
    %v415 = vand.u32 %v414, 4294901760
    %416 = vmatmul.mubr.f32.gmra.mxu0 %v415
    %v417 = vpop.f32.mrf.mxu0
    %v418 = vadd.f32 %v322, %v417
    %v419 = vpop.f32.mrf.mxu0
    %420 = vmatprep.mubr.f32.mxu0 0.0
    %v421 = vand.u32 %v35, 4294901760
    %v422 = vsub.f32 %v35, %v421
    %v423 = vand.u32 %v422, 4294901760
    %424 = vmatmul.mubr.f32.gmra.mxu0 %v423
    %v425 = vpop.f32.mrf.mxu0
    %v426 = vadd.f32 %v329, %v425
    %v427 = vpop.f32.mrf.mxu0
    %428 = vmatprep.mubr.f32.mxu0 0.0
    %v429 = vand.u32 %v38, 4294901760
    %v430 = vsub.f32 %v38, %v429
    %v431 = vand.u32 %v430, 4294901760
    %432 = vmatmul.mubr.f32.gmra.mxu0 %v431
    %v433 = vpop.f32.mrf.mxu0
    %v434 = vadd.f32 %v336, %v433
    %v435 = vpop.f32.mrf.mxu0
    %436 = vdwg.mxu0
    %437 = vmatprep.subr.mxu0 0.0
    %438 = vmatpush1.msra.mxu0 0.0
    %439 = vmatprep.subr.mxu0 0.0
    %440 = vmatpush1.msra.mxu0 0.0
    %441 = vmatprep.subr.mxu0 0.0
    %442 = vmatpush1.msra.mxu0 0.0
    %443 = vmatprep.subr.mxu0 0.0
    %444 = vmatpush1.msra.mxu0 0.0
    %445 = vmatprep.subr.mxu0 0.0
    %446 = vmatpush1.msra.mxu0 0.0
    %447 = vmatprep.subr.mxu0 0.0
    %448 = vmatpush1.msra.mxu0 0.0
    %449 = vmatprep.subr.mxu0 0.0
    %450 = vmatpush1.msra.mxu0 0.0
    %451 = vmatprep.subr.mxu0 0.0
    %452 = vmatpush1.msra.mxu0 0.0
    %453 = vmatprep.subr.mxu0 0.0
    %454 = vmatpush1.msra.mxu0 0.0
    %455 = vmatprep.subr.mxu0 0.0
    %456 = vmatpush1.msra.mxu0 0.0
    %457 = vmatprep.subr.mxu0 0.0
    %458 = vmatpush1.msra.mxu0 0.0
    %459 = vmatprep.subr.mxu0 0.0
    %460 = vmatpush1.msra.mxu0 0.0
    %461 = vmatprep.subr.mxu0 0.0
    %462 = vmatpush1.msra.mxu0 0.0
    %463 = vmatprep.subr.mxu0 0.0
    %464 = vmatpush1.msra.mxu0 0.0
    %465 = vmatprep.subr.mxu0 0.0
    %466 = vmatpush1.msra.mxu0 0.0
    %467 = vmatprep.subr.mxu0 0.0
    %v468 = vand.u32 %v42, 4294901760
    %v469 = vsub.f32 %v42, %v468
    %v470 = vand.u32 %v469, 4294901760
    %471 = vmatpush1.msra.mxu0 %v470
    %472 = vmatprep.subr.mxu0 0.0
    %473 = vmatpush2.msra.mxu0 0.0
    %474 = vmatprep.subr.mxu0 0.0
    %475 = vmatpush2.msra.mxu0 0.0
    %476 = vmatprep.subr.mxu0 0.0
    %477 = vmatpush2.msra.mxu0 0.0
    %478 = vmatprep.subr.mxu0 0.0
    %479 = vmatpush2.msra.mxu0 0.0
    %480 = vmatprep.subr.mxu0 0.0
    %481 = vmatpush2.msra.mxu0 0.0
    %482 = vmatprep.subr.mxu0 0.0
    %483 = vmatpush2.msra.mxu0 0.0
    %484 = vmatprep.subr.mxu0 0.0
    %485 = vmatpush2.msra.mxu0 0.0
    %486 = vmatprep.subr.mxu0 0.0
    %487 = vmatpush2.msra.mxu0 0.0
    %488 = vmatprep.subr.mxu0 0.0
    %489 = vmatpush2.msra.mxu0 0.0
    %490 = vmatprep.subr.mxu0 0.0
    %491 = vmatpush2.msra.mxu0 0.0
    %492 = vmatprep.subr.mxu0 0.0
    %493 = vmatpush2.msra.mxu0 0.0
    %494 = vmatprep.subr.mxu0 0.0
    %495 = vmatpush2.msra.mxu0 0.0
    %496 = vmatprep.subr.mxu0 0.0
    %497 = vmatpush2.msra.mxu0 0.0
    %498 = vmatprep.subr.mxu0 0.0
    %499 = vmatpush2.msra.mxu0 0.0
    %500 = vmatprep.subr.mxu0 0.0
    %501 = vmatpush2.msra.mxu0 0.0
    %502 = vmatprep.subr.mxu0 0.0
    %503 = vmatpush2.msra.mxu0 0.0
    %504 = vmatprep.mubr.f32.mxu0 0.0
    %v505 = vand.u32 %v29, 4294901760
    %506 = vmatmul.mubr.f32.gmra.mxu0 %v505
    %v507 = vpop.f32.mrf.mxu0
    %v508 = vadd.f32 %v410, %v507
    %v509 = vpop.f32.mrf.mxu0
    %510 = vmatprep.mubr.f32.mxu0 0.0
    %v511 = vand.u32 %v32, 4294901760
    %512 = vmatmul.mubr.f32.gmra.mxu0 %v511
    %v513 = vpop.f32.mrf.mxu0
    %v514 = vadd.f32 %v418, %v513
    %v515 = vpop.f32.mrf.mxu0
    %516 = vmatprep.mubr.f32.mxu0 0.0
    %v517 = vand.u32 %v35, 4294901760
    %518 = vmatmul.mubr.f32.gmra.mxu0 %v517
    %v519 = vpop.f32.mrf.mxu0
    %v520 = vadd.f32 %v426, %v519
    %v521 = vpop.f32.mrf.mxu0
    %522 = vmatprep.mubr.f32.mxu0 0.0
    %v523 = vand.u32 %v38, 4294901760
    %524 = vmatmul.mubr.f32.gmra.mxu0 %v523
    %v525 = vpop.f32.mrf.mxu0
    %v526 = vadd.f32 %v434, %v525
    %v527 = vpop.f32.mrf.mxu0
    %528 = vdwg.mxu0
    %529 = vmatprep.subr.mxu0 0.0
    %530 = vmatpush1.msra.mxu0 0.0
    %531 = vmatprep.subr.mxu0 0.0
    %532 = vmatpush1.msra.mxu0 0.0
    %533 = vmatprep.subr.mxu0 0.0
    %534 = vmatpush1.msra.mxu0 0.0
    %535 = vmatprep.subr.mxu0 0.0
    %536 = vmatpush1.msra.mxu0 0.0
    %537 = vmatprep.subr.mxu0 0.0
    %538 = vmatpush1.msra.mxu0 0.0
    %539 = vmatprep.subr.mxu0 0.0
    %540 = vmatpush1.msra.mxu0 0.0
    %541 = vmatprep.subr.mxu0 0.0
    %542 = vmatpush1.msra.mxu0 0.0
    %543 = vmatprep.subr.mxu0 0.0
    %544 = vmatpush1.msra.mxu0 0.0
    %545 = vmatprep.subr.mxu0 0.0
    %546 = vmatpush1.msra.mxu0 0.0
    %547 = vmatprep.subr.mxu0 0.0
    %548 = vmatpush1.msra.mxu0 0.0
    %549 = vmatprep.subr.mxu0 0.0
    %550 = vmatpush1.msra.mxu0 0.0
    %551 = vmatprep.subr.mxu0 0.0
    %552 = vmatpush1.msra.mxu0 0.0
    %553 = vmatprep.subr.mxu0 0.0
    %554 = vmatpush1.msra.mxu0 0.0
    %555 = vmatprep.subr.mxu0 0.0
    %556 = vmatpush1.msra.mxu0 0.0
    %557 = vmatprep.subr.mxu0 0.0
    %558 = vmatpush1.msra.mxu0 0.0
    %559 = vmatprep.subr.mxu0 0.0
    %v560 = vand.u32 %v42, 4294901760
    %561 = vmatpush1.msra.mxu0 %v560
    %562 = vmatprep.subr.mxu0 0.0
    %563 = vmatpush2.msra.mxu0 0.0
    %564 = vmatprep.subr.mxu0 0.0
    %565 = vmatpush2.msra.mxu0 0.0
    %566 = vmatprep.subr.mxu0 0.0
    %567 = vmatpush2.msra.mxu0 0.0
    %568 = vmatprep.subr.mxu0 0.0
    %569 = vmatpush2.msra.mxu0 0.0
    %570 = vmatprep.subr.mxu0 0.0
    %571 = vmatpush2.msra.mxu0 0.0
    %572 = vmatprep.subr.mxu0 0.0
    %573 = vmatpush2.msra.mxu0 0.0
    %574 = vmatprep.subr.mxu0 0.0
    %575 = vmatpush2.msra.mxu0 0.0
    %576 = vmatprep.subr.mxu0 0.0
    %577 = vmatpush2.msra.mxu0 0.0
    %578 = vmatprep.subr.mxu0 0.0
    %579 = vmatpush2.msra.mxu0 0.0
    %580 = vmatprep.subr.mxu0 0.0
    %581 = vmatpush2.msra.mxu0 0.0
    %582 = vmatprep.subr.mxu0 0.0
    %583 = vmatpush2.msra.mxu0 0.0
    %584 = vmatprep.subr.mxu0 0.0
    %585 = vmatpush2.msra.mxu0 0.0
    %586 = vmatprep.subr.mxu0 0.0
    %587 = vmatpush2.msra.mxu0 0.0
    %588 = vmatprep.subr.mxu0 0.0
    %589 = vmatpush2.msra.mxu0 0.0
    %590 = vmatprep.subr.mxu0 0.0
    %591 = vmatpush2.msra.mxu0 0.0
    %592 = vmatprep.subr.mxu0 0.0
    %593 = vmatpush2.msra.mxu0 0.0
    %594 = vmatprep.mubr.f32.mxu0 0.0
    %v595 = vand.u32 %v29, 4294901760
    %596 = vmatmul.mubr.f32.gmra.mxu0 %v595
    %v597 = vpop.f32.mrf.mxu0
    %v598 = vadd.f32 %v508, %v597
    %v599 = vpop.f32.mrf.mxu0
    %600 = vmatprep.mubr.f32.mxu0 0.0
    %v601 = vand.u32 %v32, 4294901760
    %602 = vmatmul.mubr.f32.gmra.mxu0 %v601
    %v603 = vpop.f32.mrf.mxu0
    %v604 = vadd.f32 %v514, %v603
    %v605 = vpop.f32.mrf.mxu0
    %606 = vmatprep.mubr.f32.mxu0 0.0
    %v607 = vand.u32 %v35, 4294901760
    %608 = vmatmul.mubr.f32.gmra.mxu0 %v607
    %v609 = vpop.f32.mrf.mxu0
    %v610 = vadd.f32 %v520, %v609
    %v611 = vpop.f32.mrf.mxu0
    %612 = vmatprep.mubr.f32.mxu0 0.0
    %v613 = vand.u32 %v38, 4294901760
    %614 = vmatmul.mubr.f32.gmra.mxu0 %v613
    %v615 = vpop.f32.mrf.mxu0
    %v616 = vadd.f32 %v526, %v615
    %v617 = vpop.f32.mrf.mxu0
    %618 = vdwg.mxu0
    %v619 = vmul.f32 %v598, 1.442695
    %v620 = vpow.pop %v619
    %v621 = vmul.f32 %v604, 1.442695
    %v622 = vpow.pop %v621
    %v623 = vmul.f32 %v610, 1.442695
    %v624 = vpow.pop %v623
    %v625 = vmul.f32 %v616, 1.442695
    %v626 = vpow.pop %v625
    %v627 = vld [vmem:[%s2] sm:$0xff]
    %v628 = vld [vmem:[%s3] sm:$0xff]
    %630 = vset.pattern.permute.xlu0 0
    %631 = vperm.xlu0 %630, %v628
    %v632 = vpop.permute.xlu0 %631
    %vm634 = vcmask 293888
    %v636 = vsel %vm634, %v627, 0
    %v639 = vsel %vm40, %v18, 0
    %641 = vmatprep.subr.mxu0 0.0
    %642 = vmatpush1.msra.mxu0 0.0
    %643 = vmatprep.subr.mxu0 0.0
    %644 = vmatpush1.msra.mxu0 0.0
    %645 = vmatprep.subr.mxu0 0.0
    %646 = vmatpush1.msra.mxu0 0.0
    %647 = vmatprep.subr.mxu0 0.0
    %648 = vmatpush1.msra.mxu0 0.0
    %649 = vmatprep.subr.mxu0 0.0
    %650 = vmatpush1.msra.mxu0 0.0
    %651 = vmatprep.subr.mxu0 0.0
    %652 = vmatpush1.msra.mxu0 0.0
    %653 = vmatprep.subr.mxu0 0.0
    %654 = vmatpush1.msra.mxu0 0.0
    %655 = vmatprep.subr.mxu0 0.0
    %656 = vmatpush1.msra.mxu0 0.0
    %657 = vmatprep.subr.mxu0 0.0
    %658 = vmatpush1.msra.mxu0 0.0
    %659 = vmatprep.subr.mxu0 0.0
    %660 = vmatpush1.msra.mxu0 0.0
    %661 = vmatprep.subr.mxu0 0.0
    %662 = vmatpush1.msra.mxu0 0.0
    %663 = vmatprep.subr.mxu0 0.0
    %v664 = vand.u32 %v639, 4294901760
    %665 = vmatpush1.msra.mxu0 %v664
    %666 = vmatprep.subr.mxu0 0.0
    %v667 = vand.u32 %v626, 4294901760
    %668 = vmatpush1.msra.mxu0 %v667
    %669 = vmatprep.subr.mxu0 0.0
    %v670 = vand.u32 %v624, 4294901760
    %671 = vmatpush1.msra.mxu0 %v670
    %672 = vmatprep.subr.mxu0 0.0
    %v673 = vand.u32 %v622, 4294901760
    %674 = vmatpush1.msra.mxu0 %v673
    %675 = vmatprep.subr.mxu0 0.0
    %v676 = vand.u32 %v620, 4294901760
    %677 = vmatpush1.msra.mxu0 %v676
    %678 = vmatprep.subr.mxu0 0.0
    %679 = vmatpush2.msra.mxu0 0.0
    %680 = vmatprep.subr.mxu0 0.0
    %681 = vmatpush2.msra.mxu0 0.0
    %682 = vmatprep.subr.mxu0 0.0
    %683 = vmatpush2.msra.mxu0 0.0
    %684 = vmatprep.subr.mxu0 0.0
    %685 = vmatpush2.msra.mxu0 0.0
    %686 = vmatprep.subr.mxu0 0.0
    %687 = vmatpush2.msra.mxu0 0.0
    %688 = vmatprep.subr.mxu0 0.0
    %689 = vmatpush2.msra.mxu0 0.0
    %690 = vmatprep.subr.mxu0 0.0
    %691 = vmatpush2.msra.mxu0 0.0
    %692 = vmatprep.subr.mxu0 0.0
    %693 = vmatpush2.msra.mxu0 0.0
    %694 = vmatprep.subr.mxu0 0.0
    %695 = vmatpush2.msra.mxu0 0.0
    %696 = vmatprep.subr.mxu0 0.0
    %697 = vmatpush2.msra.mxu0 0.0
    %698 = vmatprep.subr.mxu0 0.0
    %699 = vmatpush2.msra.mxu0 0.0
    %700 = vmatprep.subr.mxu0 0.0
    %701 = vmatpush2.msra.mxu0 0.0
    %702 = vmatprep.subr.mxu0 0.0
    %703 = vmatpush2.msra.mxu0 0.0
    %704 = vmatprep.subr.mxu0 0.0
    %705 = vmatpush2.msra.mxu0 0.0
    %706 = vmatprep.subr.mxu0 0.0
    %707 = vmatpush2.msra.mxu0 0.0
    %708 = vmatprep.subr.mxu0 0.0
    %709 = vmatpush2.msra.mxu0 0.0
    %710 = vmatprep.mubr.f32.mxu0 0.0
    %v711 = vand.u32 %v636, 4294901760
    %v712 = vsub.f32 %v636, %v711
    %v713 = vand.u32 %v712, 4294901760
    %v714 = vsub.f32 %v712, %v713
    %v715 = vand.u32 %v714, 4294901760
    %716 = vmatmul.mubr.f32.gmra.mxu0 %v715
    %v717 = vpop.f32.mrf.mxu0
    %v718 = vadd.f32 %v632, %v717
    %v719 = vpop.f32.mrf.mxu0
    %720 = vdwg.mxu0
    %721 = vmatprep.subr.mxu0 0.0
    %722 = vmatpush1.msra.mxu0 0.0
    %723 = vmatprep.subr.mxu0 0.0
    %724 = vmatpush1.msra.mxu0 0.0
    %725 = vmatprep.subr.mxu0 0.0
    %726 = vmatpush1.msra.mxu0 0.0
    %727 = vmatprep.subr.mxu0 0.0
    %728 = vmatpush1.msra.mxu0 0.0
    %729 = vmatprep.subr.mxu0 0.0
    %730 = vmatpush1.msra.mxu0 0.0
    %731 = vmatprep.subr.mxu0 0.0
    %732 = vmatpush1.msra.mxu0 0.0
    %733 = vmatprep.subr.mxu0 0.0
    %734 = vmatpush1.msra.mxu0 0.0
    %735 = vmatprep.subr.mxu0 0.0
    %736 = vmatpush1.msra.mxu0 0.0
    %737 = vmatprep.subr.mxu0 0.0
    %738 = vmatpush1.msra.mxu0 0.0
    %739 = vmatprep.subr.mxu0 0.0
    %740 = vmatpush1.msra.mxu0 0.0
    %741 = vmatprep.subr.mxu0 0.0
    %742 = vmatpush1.msra.mxu0 0.0
    %743 = vmatprep.subr.mxu0 0.0
    %v744 = vand.u32 %v639, 4294901760
    %v745 = vsub.f32 %v639, %v744
    %v746 = vand.u32 %v745, 4294901760
    %v747 = vsub.f32 %v745, %v746
    %v748 = vand.u32 %v747, 4294901760
    %749 = vmatpush1.msra.mxu0 %v748
    %750 = vmatprep.subr.mxu0 0.0
    %v751 = vand.u32 %v626, 4294901760
    %v752 = vsub.f32 %v626, %v751
    %v753 = vand.u32 %v752, 4294901760
    %v754 = vsub.f32 %v752, %v753
    %v755 = vand.u32 %v754, 4294901760
    %756 = vmatpush1.msra.mxu0 %v755
    %757 = vmatprep.subr.mxu0 0.0
    %v758 = vand.u32 %v624, 4294901760
    %v759 = vsub.f32 %v624, %v758
    %v760 = vand.u32 %v759, 4294901760
    %v761 = vsub.f32 %v759, %v760
    %v762 = vand.u32 %v761, 4294901760
    %763 = vmatpush1.msra.mxu0 %v762
    %764 = vmatprep.subr.mxu0 0.0
    %v765 = vand.u32 %v622, 4294901760
    %v766 = vsub.f32 %v622, %v765
    %v767 = vand.u32 %v766, 4294901760
    %v768 = vsub.f32 %v766, %v767
    %v769 = vand.u32 %v768, 4294901760
    %770 = vmatpush1.msra.mxu0 %v769
    %771 = vmatprep.subr.mxu0 0.0
    %v772 = vand.u32 %v620, 4294901760
    %v773 = vsub.f32 %v620, %v772
    %v774 = vand.u32 %v773, 4294901760
    %v775 = vsub.f32 %v773, %v774
    %v776 = vand.u32 %v775, 4294901760
    %777 = vmatpush1.msra.mxu0 %v776
    %778 = vmatprep.subr.mxu0 0.0
    %779 = vmatpush2.msra.mxu0 0.0
    %780 = vmatprep.subr.mxu0 0.0
    %781 = vmatpush2.msra.mxu0 0.0
    %782 = vmatprep.subr.mxu0 0.0
    %783 = vmatpush2.msra.mxu0 0.0
    %784 = vmatprep.subr.mxu0 0.0
    %785 = vmatpush2.msra.mxu0 0.0
    %786 = vmatprep.subr.mxu0 0.0
    %787 = vmatpush2.msra.mxu0 0.0
    %788 = vmatprep.subr.mxu0 0.0
    %789 = vmatpush2.msra.mxu0 0.0
    %790 = vmatprep.subr.mxu0 0.0
    %791 = vmatpush2.msra.mxu0 0.0
    %792 = vmatprep.subr.mxu0 0.0
    %793 = vmatpush2.msra.mxu0 0.0
    %794 = vmatprep.subr.mxu0 0.0
    %795 = vmatpush2.msra.mxu0 0.0
    %796 = vmatprep.subr.mxu0 0.0
    %797 = vmatpush2.msra.mxu0 0.0
    %798 = vmatprep.subr.mxu0 0.0
    %799 = vmatpush2.msra.mxu0 0.0
    %800 = vmatprep.subr.mxu0 0.0
    %801 = vmatpush2.msra.mxu0 0.0
    %802 = vmatprep.subr.mxu0 0.0
    %803 = vmatpush2.msra.mxu0 0.0
    %804 = vmatprep.subr.mxu0 0.0
    %805 = vmatpush2.msra.mxu0 0.0
    %806 = vmatprep.subr.mxu0 0.0
    %807 = vmatpush2.msra.mxu0 0.0
    %808 = vmatprep.subr.mxu0 0.0
    %809 = vmatpush2.msra.mxu0 0.0
    %810 = vmatprep.mubr.f32.mxu0 0.0
    %v811 = vand.u32 %v636, 4294901760
    %812 = vmatmul.mubr.f32.gmra.mxu0 %v811
    %v813 = vpop.f32.mrf.mxu0
    %v814 = vadd.f32 %v718, %v813
    %v815 = vpop.f32.mrf.mxu0
    %816 = vdwg.mxu0
    %817 = vmatprep.subr.mxu0 0.0
    %818 = vmatpush1.msra.mxu0 0.0
    %819 = vmatprep.subr.mxu0 0.0
    %820 = vmatpush1.msra.mxu0 0.0
    %821 = vmatprep.subr.mxu0 0.0
    %822 = vmatpush1.msra.mxu0 0.0
    %823 = vmatprep.subr.mxu0 0.0
    %824 = vmatpush1.msra.mxu0 0.0
    %825 = vmatprep.subr.mxu0 0.0
    %826 = vmatpush1.msra.mxu0 0.0
    %827 = vmatprep.subr.mxu0 0.0
    %828 = vmatpush1.msra.mxu0 0.0
    %829 = vmatprep.subr.mxu0 0.0
    %830 = vmatpush1.msra.mxu0 0.0
    %831 = vmatprep.subr.mxu0 0.0
    %832 = vmatpush1.msra.mxu0 0.0
    %833 = vmatprep.subr.mxu0 0.0
    %834 = vmatpush1.msra.mxu0 0.0
    %835 = vmatprep.subr.mxu0 0.0
    %836 = vmatpush1.msra.mxu0 0.0
    %837 = vmatprep.subr.mxu0 0.0
    %838 = vmatpush1.msra.mxu0 0.0
    %839 = vmatprep.subr.mxu0 0.0
    %v840 = vand.u32 %v639, 4294901760
    %v841 = vsub.f32 %v639, %v840
    %842 = vmatpush1.msra.mxu0 %v841
    %843 = vmatprep.subr.mxu0 0.0
    %v844 = vand.u32 %v626, 4294901760
    %v845 = vsub.f32 %v626, %v844
    %846 = vmatpush1.msra.mxu0 %v845
    %847 = vmatprep.subr.mxu0 0.0
    %v848 = vand.u32 %v624, 4294901760
    %v849 = vsub.f32 %v624, %v848
    %850 = vmatpush1.msra.mxu0 %v849
    %851 = vmatprep.subr.mxu0 0.0
    %v852 = vand.u32 %v622, 4294901760
    %v853 = vsub.f32 %v622, %v852
    %854 = vmatpush1.msra.mxu0 %v853
    %855 = vmatprep.subr.mxu0 0.0
    %v856 = vand.u32 %v620, 4294901760
    %v857 = vsub.f32 %v620, %v856
    %858 = vmatpush1.msra.mxu0 %v857
    %859 = vmatprep.subr.mxu0 0.0
    %860 = vmatpush2.msra.mxu0 0.0
    %861 = vmatprep.subr.mxu0 0.0
    %862 = vmatpush2.msra.mxu0 0.0
    %863 = vmatprep.subr.mxu0 0.0
    %864 = vmatpush2.msra.mxu0 0.0
    %865 = vmatprep.subr.mxu0 0.0
    %866 = vmatpush2.msra.mxu0 0.0
    %867 = vmatprep.subr.mxu0 0.0
    %868 = vmatpush2.msra.mxu0 0.0
    %869 = vmatprep.subr.mxu0 0.0
    %870 = vmatpush2.msra.mxu0 0.0
    %871 = vmatprep.subr.mxu0 0.0
    %872 = vmatpush2.msra.mxu0 0.0
    %873 = vmatprep.subr.mxu0 0.0
    %874 = vmatpush2.msra.mxu0 0.0
    %875 = vmatprep.subr.mxu0 0.0
    %876 = vmatpush2.msra.mxu0 0.0
    %877 = vmatprep.subr.mxu0 0.0
    %878 = vmatpush2.msra.mxu0 0.0
    %879 = vmatprep.subr.mxu0 0.0
    %880 = vmatpush2.msra.mxu0 0.0
    %881 = vmatprep.subr.mxu0 0.0
    %882 = vmatpush2.msra.mxu0 0.0
    %883 = vmatprep.subr.mxu0 0.0
    %884 = vmatpush2.msra.mxu0 0.0
    %885 = vmatprep.subr.mxu0 0.0
    %886 = vmatpush2.msra.mxu0 0.0
    %887 = vmatprep.subr.mxu0 0.0
    %888 = vmatpush2.msra.mxu0 0.0
    %889 = vmatprep.subr.mxu0 0.0
    %890 = vmatpush2.msra.mxu0 0.0
    %891 = vmatprep.mubr.f32.mxu0 0.0
    %v892 = vand.u32 %v636, 4294901760
    %v893 = vsub.f32 %v636, %v892
    %894 = vmatmul.mubr.f32.gmra.mxu0 %v893
    %v895 = vpop.f32.mrf.mxu0
    %v896 = vadd.f32 %v814, %v895
    %v897 = vpop.f32.mrf.mxu0
    %898 = vdwg.mxu0
    %899 = vmatprep.subr.mxu0 0.0
    %900 = vmatpush1.msra.mxu0 0.0
    %901 = vmatprep.subr.mxu0 0.0
    %902 = vmatpush1.msra.mxu0 0.0
    %903 = vmatprep.subr.mxu0 0.0
    %904 = vmatpush1.msra.mxu0 0.0
    %905 = vmatprep.subr.mxu0 0.0
    %906 = vmatpush1.msra.mxu0 0.0
    %907 = vmatprep.subr.mxu0 0.0
    %908 = vmatpush1.msra.mxu0 0.0
    %909 = vmatprep.subr.mxu0 0.0
    %910 = vmatpush1.msra.mxu0 0.0
    %911 = vmatprep.subr.mxu0 0.0
    %912 = vmatpush1.msra.mxu0 0.0
    %913 = vmatprep.subr.mxu0 0.0
    %914 = vmatpush1.msra.mxu0 0.0
    %915 = vmatprep.subr.mxu0 0.0
    %916 = vmatpush1.msra.mxu0 0.0
    %917 = vmatprep.subr.mxu0 0.0
    %918 = vmatpush1.msra.mxu0 0.0
    %919 = vmatprep.subr.mxu0 0.0
    %920 = vmatpush1.msra.mxu0 0.0
    %921 = vmatprep.subr.mxu0 0.0
    %v922 = vand.u32 %v639, 4294901760
    %923 = vmatpush1.msra.mxu0 %v922
    %924 = vmatprep.subr.mxu0 0.0
    %v925 = vand.u32 %v626, 4294901760
    %926 = vmatpush1.msra.mxu0 %v925
    %927 = vmatprep.subr.mxu0 0.0
    %v928 = vand.u32 %v624, 4294901760
    %929 = vmatpush1.msra.mxu0 %v928
    %930 = vmatprep.subr.mxu0 0.0
    %v931 = vand.u32 %v622, 4294901760
    %932 = vmatpush1.msra.mxu0 %v931
    %933 = vmatprep.subr.mxu0 0.0
    %v934 = vand.u32 %v620, 4294901760
    %935 = vmatpush1.msra.mxu0 %v934
    %936 = vmatprep.subr.mxu0 0.0
    %937 = vmatpush2.msra.mxu0 0.0
    %938 = vmatprep.subr.mxu0 0.0
    %939 = vmatpush2.msra.mxu0 0.0
    %940 = vmatprep.subr.mxu0 0.0
    %941 = vmatpush2.msra.mxu0 0.0
    %942 = vmatprep.subr.mxu0 0.0
    %943 = vmatpush2.msra.mxu0 0.0
    %944 = vmatprep.subr.mxu0 0.0
    %945 = vmatpush2.msra.mxu0 0.0
    %946 = vmatprep.subr.mxu0 0.0
    %947 = vmatpush2.msra.mxu0 0.0
    %948 = vmatprep.subr.mxu0 0.0
    %949 = vmatpush2.msra.mxu0 0.0
    %950 = vmatprep.subr.mxu0 0.0
    %951 = vmatpush2.msra.mxu0 0.0
    %952 = vmatprep.subr.mxu0 0.0
    %953 = vmatpush2.msra.mxu0 0.0
    %954 = vmatprep.subr.mxu0 0.0
    %955 = vmatpush2.msra.mxu0 0.0
    %956 = vmatprep.subr.mxu0 0.0
    %957 = vmatpush2.msra.mxu0 0.0
    %958 = vmatprep.subr.mxu0 0.0
    %959 = vmatpush2.msra.mxu0 0.0
    %960 = vmatprep.subr.mxu0 0.0
    %961 = vmatpush2.msra.mxu0 0.0
    %962 = vmatprep.subr.mxu0 0.0
    %963 = vmatpush2.msra.mxu0 0.0
    %964 = vmatprep.subr.mxu0 0.0
    %965 = vmatpush2.msra.mxu0 0.0
    %966 = vmatprep.subr.mxu0 0.0
    %967 = vmatpush2.msra.mxu0 0.0
    %968 = vmatprep.mubr.f32.mxu0 0.0
    %v969 = vand.u32 %v636, 4294901760
    %v970 = vsub.f32 %v636, %v969
    %v971 = vand.u32 %v970, 4294901760
    %972 = vmatmul.mubr.f32.gmra.mxu0 %v971
    %v973 = vpop.f32.mrf.mxu0
    %v974 = vadd.f32 %v896, %v973
    %v975 = vpop.f32.mrf.mxu0
    %976 = vdwg.mxu0
    %977 = vmatprep.subr.mxu0 0.0
    %978 = vmatpush1.msra.mxu0 0.0
    %979 = vmatprep.subr.mxu0 0.0
    %980 = vmatpush1.msra.mxu0 0.0
    %981 = vmatprep.subr.mxu0 0.0
    %982 = vmatpush1.msra.mxu0 0.0
    %983 = vmatprep.subr.mxu0 0.0
    %984 = vmatpush1.msra.mxu0 0.0
    %985 = vmatprep.subr.mxu0 0.0
    %986 = vmatpush1.msra.mxu0 0.0
    %987 = vmatprep.subr.mxu0 0.0
    %988 = vmatpush1.msra.mxu0 0.0
    %989 = vmatprep.subr.mxu0 0.0
    %990 = vmatpush1.msra.mxu0 0.0
    %991 = vmatprep.subr.mxu0 0.0
    %992 = vmatpush1.msra.mxu0 0.0
    %993 = vmatprep.subr.mxu0 0.0
    %994 = vmatpush1.msra.mxu0 0.0
    %995 = vmatprep.subr.mxu0 0.0
    %996 = vmatpush1.msra.mxu0 0.0
    %997 = vmatprep.subr.mxu0 0.0
    %998 = vmatpush1.msra.mxu0 0.0
    %999 = vmatprep.subr.mxu0 0.0
    %v1000 = vand.u32 %v639, 4294901760
    %v1001 = vsub.f32 %v639, %v1000
    %v1002 = vand.u32 %v1001, 4294901760
    %1003 = vmatpush1.msra.mxu0 %v1002
    %1004 = vmatprep.subr.mxu0 0.0
    %v1005 = vand.u32 %v626, 4294901760
    %v1006 = vsub.f32 %v626, %v1005
    %v1007 = vand.u32 %v1006, 4294901760
    %1008 = vmatpush1.msra.mxu0 %v1007
    %1009 = vmatprep.subr.mxu0 0.0
    %v1010 = vand.u32 %v624, 4294901760
    %v1011 = vsub.f32 %v624, %v1010
    %v1012 = vand.u32 %v1011, 4294901760
    %1013 = vmatpush1.msra.mxu0 %v1012
    %1014 = vmatprep.subr.mxu0 0.0
    %v1015 = vand.u32 %v622, 4294901760
    %v1016 = vsub.f32 %v622, %v1015
    %v1017 = vand.u32 %v1016, 4294901760
    %1018 = vmatpush1.msra.mxu0 %v1017
    %1019 = vmatprep.subr.mxu0 0.0
    %v1020 = vand.u32 %v620, 4294901760
    %v1021 = vsub.f32 %v620, %v1020
    %v1022 = vand.u32 %v1021, 4294901760
    %1023 = vmatpush1.msra.mxu0 %v1022
    %1024 = vmatprep.subr.mxu0 0.0
    %1025 = vmatpush2.msra.mxu0 0.0
    %1026 = vmatprep.subr.mxu0 0.0
    %1027 = vmatpush2.msra.mxu0 0.0
    %1028 = vmatprep.subr.mxu0 0.0
    %1029 = vmatpush2.msra.mxu0 0.0
    %1030 = vmatprep.subr.mxu0 0.0
    %1031 = vmatpush2.msra.mxu0 0.0
    %1032 = vmatprep.subr.mxu0 0.0
    %1033 = vmatpush2.msra.mxu0 0.0
    %1034 = vmatprep.subr.mxu0 0.0
    %1035 = vmatpush2.msra.mxu0 0.0
    %1036 = vmatprep.subr.mxu0 0.0
    %1037 = vmatpush2.msra.mxu0 0.0
    %1038 = vmatprep.subr.mxu0 0.0
    %1039 = vmatpush2.msra.mxu0 0.0
    %1040 = vmatprep.subr.mxu0 0.0
    %1041 = vmatpush2.msra.mxu0 0.0
    %1042 = vmatprep.subr.mxu0 0.0
    %1043 = vmatpush2.msra.mxu0 0.0
    %1044 = vmatprep.subr.mxu0 0.0
    %1045 = vmatpush2.msra.mxu0 0.0
    %1046 = vmatprep.subr.mxu0 0.0
    %1047 = vmatpush2.msra.mxu0 0.0
    %1048 = vmatprep.subr.mxu0 0.0
    %1049 = vmatpush2.msra.mxu0 0.0
    %1050 = vmatprep.subr.mxu0 0.0
    %1051 = vmatpush2.msra.mxu0 0.0
    %1052 = vmatprep.subr.mxu0 0.0
    %1053 = vmatpush2.msra.mxu0 0.0
    %1054 = vmatprep.subr.mxu0 0.0
    %1055 = vmatpush2.msra.mxu0 0.0
    %1056 = vmatprep.mubr.f32.mxu0 0.0
    %v1057 = vand.u32 %v636, 4294901760
    %1058 = vmatmul.mubr.f32.gmra.mxu0 %v1057
    %v1059 = vpop.f32.mrf.mxu0
    %v1060 = vadd.f32 %v974, %v1059
    %v1061 = vpop.f32.mrf.mxu0
    %1062 = vdwg.mxu0
    %1063 = vmatprep.subr.mxu0 0.0
    %1064 = vmatpush1.msra.mxu0 0.0
    %1065 = vmatprep.subr.mxu0 0.0
    %1066 = vmatpush1.msra.mxu0 0.0
    %1067 = vmatprep.subr.mxu0 0.0
    %1068 = vmatpush1.msra.mxu0 0.0
    %1069 = vmatprep.subr.mxu0 0.0
    %1070 = vmatpush1.msra.mxu0 0.0
    %1071 = vmatprep.subr.mxu0 0.0
    %1072 = vmatpush1.msra.mxu0 0.0
    %1073 = vmatprep.subr.mxu0 0.0
    %1074 = vmatpush1.msra.mxu0 0.0
    %1075 = vmatprep.subr.mxu0 0.0
    %1076 = vmatpush1.msra.mxu0 0.0
    %1077 = vmatprep.subr.mxu0 0.0
    %1078 = vmatpush1.msra.mxu0 0.0
    %1079 = vmatprep.subr.mxu0 0.0
    %1080 = vmatpush1.msra.mxu0 0.0
    %1081 = vmatprep.subr.mxu0 0.0
    %1082 = vmatpush1.msra.mxu0 0.0
    %1083 = vmatprep.subr.mxu0 0.0
    %1084 = vmatpush1.msra.mxu0 0.0
    %1085 = vmatprep.subr.mxu0 0.0
    %v1086 = vand.u32 %v639, 4294901760
    %1087 = vmatpush1.msra.mxu0 %v1086
    %1088 = vmatprep.subr.mxu0 0.0
    %v1089 = vand.u32 %v626, 4294901760
    %1090 = vmatpush1.msra.mxu0 %v1089
    %1091 = vmatprep.subr.mxu0 0.0
    %v1092 = vand.u32 %v624, 4294901760
    %1093 = vmatpush1.msra.mxu0 %v1092
    %1094 = vmatprep.subr.mxu0 0.0
    %v1095 = vand.u32 %v622, 4294901760
    %1096 = vmatpush1.msra.mxu0 %v1095
    %1097 = vmatprep.subr.mxu0 0.0
    %v1098 = vand.u32 %v620, 4294901760
    %1099 = vmatpush1.msra.mxu0 %v1098
    %1100 = vmatprep.subr.mxu0 0.0
    %1101 = vmatpush2.msra.mxu0 0.0
    %1102 = vmatprep.subr.mxu0 0.0
    %1103 = vmatpush2.msra.mxu0 0.0
    %1104 = vmatprep.subr.mxu0 0.0
    %1105 = vmatpush2.msra.mxu0 0.0
    %1106 = vmatprep.subr.mxu0 0.0
    %1107 = vmatpush2.msra.mxu0 0.0
    %1108 = vmatprep.subr.mxu0 0.0
    %1109 = vmatpush2.msra.mxu0 0.0
    %1110 = vmatprep.subr.mxu0 0.0
    %1111 = vmatpush2.msra.mxu0 0.0
    %1112 = vmatprep.subr.mxu0 0.0
    %1113 = vmatpush2.msra.mxu0 0.0
    %1114 = vmatprep.subr.mxu0 0.0
    %1115 = vmatpush2.msra.mxu0 0.0
    %1116 = vmatprep.subr.mxu0 0.0
    %1117 = vmatpush2.msra.mxu0 0.0
    %1118 = vmatprep.subr.mxu0 0.0
    %1119 = vmatpush2.msra.mxu0 0.0
    %1120 = vmatprep.subr.mxu0 0.0
    %1121 = vmatpush2.msra.mxu0 0.0
    %1122 = vmatprep.subr.mxu0 0.0
    %1123 = vmatpush2.msra.mxu0 0.0
    %1124 = vmatprep.subr.mxu0 0.0
    %1125 = vmatpush2.msra.mxu0 0.0
    %1126 = vmatprep.subr.mxu0 0.0
    %1127 = vmatpush2.msra.mxu0 0.0
    %1128 = vmatprep.subr.mxu0 0.0
    %1129 = vmatpush2.msra.mxu0 0.0
    %1130 = vmatprep.subr.mxu0 0.0
    %1131 = vmatpush2.msra.mxu0 0.0
    %1132 = vmatprep.mubr.f32.mxu0 0.0
    %v1133 = vand.u32 %v636, 4294901760
    %1134 = vmatmul.mubr.f32.gmra.mxu0 %v1133
    %v1135 = vpop.f32.mrf.mxu0
    %v1136 = vadd.f32 %v1060, %v1135
    %v1137 = vpop.f32.mrf.mxu0
    %1138 = vdwg.mxu0
    %1139 = vst [vmem:[#allocation2] sm:$0xff] %v1136
    // Predicated region
    $region18: #{tpu_custom_call.1} parent=1 // pred_check
      _
    $region19: #{tpu_custom_call.1} parent=1 // pred_check_branch
      %1141 = sbr.rel (0) target = $region21
    $region20: #{tpu_custom_call.1} parent=1 // pred_region
      %s1143 = ssub.s32 128, 128
      %1144 = vsyncadd [#allocation3], %s1143
      %s1146 = sshll.u32 [#allocation2], 4
      %s1147 = int_to_ptr.vmem [resolvable:$true] %s1146
      %1149 = dma.vmem_to_hbm [thread:$0]  %s1147, 128, %s4, [#allocation3]
    $region21: #{tpu_custom_call.1} parent=1 // pred_fallthru
      _
    // Predicated region
    $region22: #{tpu_custom_call.1} parent=1 // pred_check
      _
    $region23: #{tpu_custom_call.1} parent=1 // pred_check_branch
      %1151 = sbr.rel (0) target = $region25
    $region24: #{tpu_custom_call.1} parent=1 // pred_region
      %1152 = dma.done [#allocation3], 128
    $region25: #{tpu_custom_call.1} parent=1 // pred_fallthru
      _
    %1153 = vsyncpa [#allocation3], 1

</llo_original>
